<compile_context>
chip_gen: v5e
topology: v5e:2x2
jax: 0.10.0
libtpu: 0.0.40
codegen_flags: <defaults>
</compile_context>

<pallas_src>
import functools
import math

import jax
import jax.numpy as jnp
from jax.experimental import pallas as pl
from jax.experimental.pallas import tpu as pltpu


def _pe_add_kernel(x_ref, pe_ref, o_ref, *, scale):
    # x_ref : [B, block_t, d_model]
    # pe_ref: [block_t, d_model]  (rows t_tile*block_t .. of the sin/cos table)
    # o_ref : [B, block_t, d_model]
    x = x_ref[...]
    pe = pe_ref[...]
    # TODO(synk): training-mode dropout would use pltpu.prng_seed +
    # pltpu.prng_random_bits for the mask; identity at inference.
    o_ref[...] = (x * scale + pe[None, :, :]).astype(o_ref.dtype)


def make_sinusoidal_pe(max_len, d_model, dtype=jnp.float32):
    """Same table as the PyTorch module's registered 'pe' buffer ([max_len, d_model])."""
    position = jnp.arange(max_len, dtype=jnp.float32)[:, None]            # [L, 1]
    div_term = jnp.exp(
        jnp.arange(0, d_model, 2, dtype=jnp.float32) * -(math.log(10000.0) / d_model)
    )                                                                     # [d_model//2]
    angles = position * div_term                                          # [L, d_model//2]
    pe = jnp.zeros((max_len, d_model), dtype=jnp.float32)
    pe = pe.at[:, 0::2].set(jnp.sin(angles))
    pe = pe.at[:, 1::2].set(jnp.cos(angles))
    return pe.astype(dtype)


def _pick_block_t(B, T, D, itemsize):
    """Pick a sublane-aligned time tile from a byte budget (static shapes)."""
    # Double-buffered working set: 2 * (x_tile + out_tile + pe_tile)
    #   = 2 * (2*B + 1) * block_t * D * itemsize.  Keep under ~24 MiB so the
    #   v7x scoped-VMEM default (32 MiB) has headroom; v5e/v6e have 128 MiB.
    vmem_budget = 24 * 1024 * 1024
    per_row = 2 * (2 * B + 1) * D * itemsize
    bt_vmem = max(8, vmem_budget // per_row)
    # Target a few MiB per x tile (>= ~1 MiB hits ~85% of HBM roofline).
    target_rows = max(8, (4 << 20) // max(1, B * D * itemsize))
    bt = min(T, bt_vmem, target_rows)
    # Keep >= 2 grid steps on the parallel axis (2 TCs on v7x) when T allows.
    if T >= 16 and bt >= T:
        bt = (T + 1) // 2
    bt = max(8, (bt // 8) * 8)
    return int(bt)


@functools.partial(jax.jit, static_argnames=("scale", "block_t"))
def positional_encoding_add(xs, pe, *, scale, block_t=None):
    """xs: [B, T, D], pe: [T', D] (T' >= T, same dtype as xs) -> [B, T, D]."""
    B, T, D = xs.shape
    itemsize = jnp.dtype(xs.dtype).itemsize

    if block_t is None:
        block_t = _pick_block_t(B, T, D, itemsize)
    block_t = max(8, (int(block_t) // 8) * 8)

    num_tiles = pl.cdiv(T, block_t)
    grid = (num_tiles,)

    # x read + out write + pe read once per time tile (matches actual schedule).
    cost = pl.CostEstimate(
        flops=2 * B * T * D,
        transcendentals=0,
        bytes_accessed=(2 * B * T * D + T * D) * itemsize,
    )

    kernel = functools.partial(_pe_add_kernel, scale=scale)

    return pl.pallas_call(
        kernel,
        out_shape=jax.ShapeDtypeStruct((B, T, D), xs.dtype),
        grid_spec=pltpu.PrefetchScalarGridSpec(
            num_scalar_prefetch=0,
            grid=grid,
            in_specs=[
                # Full batch folded into the block; time tile on sublanes,
                # d_model lane-dense on the 128-lane axis.
                pl.BlockSpec((B, block_t, D), lambda j: (0, j, 0)),
                # PE tile: rows [j*block_t, (j+1)*block_t), streamed once.
                pl.BlockSpec((block_t, D), lambda j: (j, 0)),
            ],
            out_specs=pl.BlockSpec((B, block_t, D), lambda j: (0, j, 0)),
        ),
        compiler_params=pltpu.CompilerParams(
            dimension_semantics=("parallel",)),
        cost_estimate=cost,
    )(xs, pe)


def positional_encoding(xs, pe_table, *, d_model, pe_type="add", block_t=None):
    """Eval-mode forward of PositionalEncoding."""
    scale = math.sqrt(d_model)
    if pe_type == "none":
        return xs * scale
    if pe_type != "add":
        # TODO(synk): pe_type='concat' (feature concat) and pe_type='1dconv'
        # (CausalConv1d + LayerNorm + ReLU stack) are not implemented here.
        raise NotImplementedError(pe_type)

    B, T, D = xs.shape
    assert D == d_model, "xs feature dim must equal d_model"
    assert T <= pe_table.shape[0], "sequence length exceeds PE table max_len"

    # Stream the PE table in the activation dtype (deliberate precision
    # tradeoff for bf16: PE values are in [-1, 1]).  Only the first T rows.
    pe = pe_table[:T].astype(xs.dtype)

    # Guard: keep the output lane-dense (full 128-lane vst, not masked stores).
    d_pad = ((D + 127) // 128) * 128
    if d_pad != D:
        xs_p = jnp.pad(xs, ((0, 0), (0, 0), (0, d_pad - D)))
        pe_p = jnp.pad(pe, ((0, 0), (0, d_pad - D)))
        out = positional_encoding_add(xs_p, pe_p, scale=scale, block_t=block_t)
        return out[..., :D]
    return positional_encoding_add(xs, pe, scale=scale, block_t=block_t)


if __name__ == "__main__":
    # Module config: d_model lane-dense (multiple of 128), small B/T.
    B, T, d_model = 2, 64, 128
    max_len = 5000

    key = jax.random.PRNGKey(0)
    xs = jax.random.normal(key, (B, T, d_model), dtype=jnp.float32)

    pe_table = make_sinusoidal_pe(max_len, d_model)   # [max_len, d_model] buffer

    out = positional_encoding(xs, pe_table, d_model=d_model, pe_type="add")
    jax.block_until_ready(out)

    # Pure-JAX reference of the same math (eval mode: dropout is identity).
    ref = xs * math.sqrt(d_model) + pe_table[None, :T, :]
    assert out.shape == (B, T, d_model)
    assert jnp.allclose(out, ref, atol=1e-5, rtol=1e-5)

    # Also exercise the explicit-tile path and the pe_type='none' path.
    out2 = positional_encoding(xs, pe_table, d_model=d_model, pe_type="add",
                               block_t=32)
    jax.block_until_ready(out2)
    assert jnp.allclose(out2, ref, atol=1e-5, rtol=1e-5)
    out3 = positional_encoding(xs, pe_table, d_model=d_model, pe_type="none")
    assert jnp.allclose(out3, xs * math.sqrt(d_model), atol=1e-5, rtol=1e-5)

    print("KERNEL_OK")
</pallas_src>

<mosaic_0001>
module attributes {stable_mosaic.version = 11 : i64} {
  func.func @_pe_add_kernel(%arg0: i32, %arg1: memref<2x32x128xf32, #tpu.memory_space<vmem>>, %arg2: memref<32x128xf32, #tpu.memory_space<vmem>>, %arg3: memref<2x32x128xf32, #tpu.memory_space<vmem>>) attributes {dimension_semantics = [#tpu.dimension_semantics<parallel>], iteration_bounds = array<i64: 2>, scalar_prefetch = 0 : i64, scratch_operands = 0 : i64, tpu.core_type = #tpu.core_type<tc>, window_params = [{transform_indices = @transform_0, window_bounds = array<i64: 2, 32, 128>}, {transform_indices = @transform_1, window_bounds = array<i64: 32, 128>}, {transform_indices = @transform_2, window_bounds = array<i64: 2, 32, 128>}]} {
    %c0 = arith.constant 0 : index
    %c0_0 = arith.constant 0 : index
    %c0_1 = arith.constant 0 : index
    %0 = vector.load %arg1[%c0, %c0_0, %c0_1] : memref<2x32x128xf32, #tpu.memory_space<vmem>>, vector<2x32x128xf32>
    %c0_2 = arith.constant 0 : index
    %c0_3 = arith.constant 0 : index
    %1 = vector.load %arg2[%c0_2, %c0_3] : memref<32x128xf32, #tpu.memory_space<vmem>>, vector<32x128xf32>
    %cst = arith.constant 11.3137083 : f32
    %2 = vector.broadcast %cst : f32 to vector<2x32x128xf32>
    %3 = arith.mulf %0, %2 : vector<2x32x128xf32>
    %4 = vector.shape_cast %1 : vector<32x128xf32> to vector<1x32x128xf32>
    %5 = vector.broadcast %4 : vector<1x32x128xf32> to vector<2x32x128xf32>
    %6 = arith.addf %3, %5 : vector<2x32x128xf32>
    %c0_4 = arith.constant 0 : index
    %c0_5 = arith.constant 0 : index
    %c0_6 = arith.constant 0 : index
    %7 = vector.load %arg3[%c0_4, %c0_5, %c0_6] : memref<2x32x128xf32, #tpu.memory_space<vmem>>, vector<2x32x128xf32>
    tpu.vector_store %arg3[%c0_4, %c0_5, %c0_6], %6 {strides = array<i32>} : memref<2x32x128xf32, #tpu.memory_space<vmem>>, vector<2x32x128xf32>,
    return
  }
  func.func @transform_0(%arg0: i32) -> (i32, i32, i32) {
    %c0_i32 = arith.constant 0 : i32
    %c0_i32_0 = arith.constant 0 : i32
    %c0_i32_1 = arith.constant 0 : i32
    return %c0_i32, %arg0, %c0_i32_0 : i32, i32, i32
  }
  func.func @transform_1(%arg0: i32) -> (i32, i32) {
    %c0_i32 = arith.constant 0 : i32
    %c0_i32_0 = arith.constant 0 : i32
    return %arg0, %c0_i32 : i32, i32
  }
  func.func @transform_2(%arg0: i32) -> (i32, i32, i32) {
    %c0_i32 = arith.constant 0 : i32
    %c0_i32_0 = arith.constant 0 : i32
    %c0_i32_1 = arith.constant 0 : i32
    return %c0_i32, %arg0, %c0_i32_0 : i32, i32, i32
  }
}

</mosaic_0001>

<llo_original>
// kernel: positional_encoding_add.1
$region0: #{positional_encoding_add.1}
  #allocation0 [shape = 'u32[]', space=smem, size = 0x4, offset = 0x4, fixed_abs, tag = 'smem constant byte address 0x4 - core index']
  #allocation1 [shape = 'u32[72,128]{1,0:T(1,128)}', space=vmem, size = 0x9000, scoped, tag = 'internal scratch']
  #allocation8 [shape = 's32[]', space=sflag, size = 0x4, offset = 0, fixed_abs, tag = 'sflag constant byte address 0x0 - dummy sync flag']
  #allocation10 [shape = 's32[]', space=sflag, size = 0x4, offset = 0, fixed_abs, tag = 'sflag constant byte address 0x0 - dummy sync flag']
  %s0 = inlined_call_operand.hbm [shape: f32[2,64,128], index: 0, kind: input, shape index: {}]
  %s1 = inlined_call_operand.hbm [shape: f32[64,128], index: 1, kind: input, shape index: {}]
  %s2 = inlined_call_operand.hbm [shape: f32[2,64,128], index: 2, kind: output, shape index: {}]
  %s3 = sld [smem:[#allocation0]]
  $region49: #{positional_encoding_add.1} parent=0
    _
  %s5 = ssub.s32 1, %s3
  %s6 = scalar_select 0, %s5, %s3
  $region1: #{positional_encoding_add.1} parent=0
    #allocation2 [shape = 'u8[65536]{0}', space=vmem, size = 0x10000, scoped, tag = 'input window, operand 0']
    #allocation3 [shape = 's32[2]{0}', space=sflag, size = 0x8, scoped, tag = 'scoped memory for positional_encoding_add.1']
    #allocation4 [shape = 's32[2]{0}', space=sflag, size = 0x8, scoped, tag = 'scoped memory for positional_encoding_add.1']
    #allocation5 [shape = 'u8[32768]{0}', space=vmem, size = 0x8000, scoped, tag = 'input window, operand 1']
    #allocation6 [shape = 's32[2]{0}', space=sflag, size = 0x8, scoped, tag = 'scoped memory for positional_encoding_add.1']
    #allocation7 [shape = 'u8[65536]{0}', space=vmem, size = 0x10000, scoped, tag = 'output window, operand 0']
    %7 = vsyncpa [#allocation3], 0
    %s8 = scalar_lea.sflag [#allocation3], 1
    %9 = vsyncpa %s8, 0
    %10 = vsyncpa [#allocation6], 0
    %s11 = scalar_lea.sflag [#allocation6], 1
    %12 = vsyncpa %s11, 0
    %13 = vsyncpa [#allocation4], 0
    %s14 = scalar_lea.sflag [#allocation4], 1
    %15 = vsyncpa %s14, 0
    loop: start=0, step=1, limit=4
    $region2: #{positional_encoding_add.1} parent=1 // loop_pre_header
      _
    $region3: #{positional_encoding_add.1} parent=1 // loop_header
      %s17 = sphi 0, %s21
      %p18 = scmp.ge.s32.totalorder %s17, 4
      %s27 = sphi 0, %s29
      %s30 = sphi 0, %s27
      %s31 = sphi 0, %s30
      %s47 = sphi 0, %s31
      %s53 = sphi 0, %s55
      %s56 = sphi 0, %s53
      %s57 = sphi 0, %s56
      %s73 = sphi 0, %s57
      %s79 = sphi 0, %s81
      %s82 = sphi 0, %s79
      %s83 = sphi 0, %s82
      %s99 = sphi 0, %s83
    $region4: #{positional_encoding_add.1} parent=1 // loop_header_branch
      %20 = sbr.rel (%p18) target = $region8
    $region5: #{positional_encoding_add.1} parent=1 // loop_body
      %s22 = ssub.s32 %s17, 1
      %s23 = ssub.s32 %s17, 2
      %s24 = sadd.s32 %s17, 1
      %s25 = ssub.s32 %s17, %s24
      %p26 = scmp.eq.s32.totalorder %s25, 0
      %s28 = sadd.s32 %s27, 1
      %s29 = scalar_select %p26, %s27, %s28
      %p32 = pneg %p26
      %p33 = scmp.eq.s32.totalorder %s17, 1
      %p34 = por %p32, %p33
      %p35 = scmp.ne.s32.totalorder %s27, %s30
      %p36 = scmp.eq.s32.totalorder %s17, 0
      %p37 = por %p35, %p36
      %p38 = scmp.ne.s32.totalorder %s27, %s30
      %p39 = scmp.eq.s32.totalorder %s22, 1
      %p40 = por %p38, %p39
      %p41 = scmp.ne.s32.totalorder %s30, %s31
      %p42 = scmp.eq.s32.totalorder %s22, 0
      %p43 = por %p41, %p42
      %p44 = scmp.ne.s32.totalorder %s30, %s31
      %p45 = scmp.eq.s32.totalorder %s23, 1
      %p46 = por %p44, %p45
      %p48 = scmp.ne.s32.totalorder %s31, %s47
      %p49 = scmp.eq.s32.totalorder %s23, 0
      %p50 = por %p48, %p49
      %s51 = ssub.s32 %s17, %s24
      %p52 = scmp.eq.s32.totalorder %s51, 0
      %s54 = sadd.s32 %s53, 1
      %s55 = scalar_select %p52, %s53, %s54
      %p58 = pneg %p52
      %p59 = scmp.eq.s32.totalorder %s17, 1
      %p60 = por %p58, %p59
      %p61 = scmp.ne.s32.totalorder %s53, %s56
      %p62 = scmp.eq.s32.totalorder %s17, 0
      %p63 = por %p61, %p62
      %p64 = scmp.ne.s32.totalorder %s53, %s56
      %p65 = scmp.eq.s32.totalorder %s22, 1
      %p66 = por %p64, %p65
      %p67 = scmp.ne.s32.totalorder %s56, %s57
      %p68 = scmp.eq.s32.totalorder %s22, 0
      %p69 = por %p67, %p68
      %p70 = scmp.ne.s32.totalorder %s56, %s57
      %p71 = scmp.eq.s32.totalorder %s23, 1
      %p72 = por %p70, %p71
      %p74 = scmp.ne.s32.totalorder %s57, %s73
      %p75 = scmp.eq.s32.totalorder %s23, 0
      %p76 = por %p74, %p75
      %s77 = ssub.s32 %s17, %s24
      %p78 = scmp.eq.s32.totalorder %s77, 0
      %s80 = sadd.s32 %s79, 1
      %s81 = scalar_select %p78, %s79, %s80
      %p84 = pneg %p78
      %p85 = scmp.eq.s32.totalorder %s17, 1
      %p86 = por %p84, %p85
      %p87 = scmp.ne.s32.totalorder %s79, %s82
      %p88 = scmp.eq.s32.totalorder %s17, 0
      %p89 = por %p87, %p88
      %p90 = scmp.ne.s32.totalorder %s79, %s82
      %p91 = scmp.eq.s32.totalorder %s22, 1
      %p92 = por %p90, %p91
      %p93 = scmp.ne.s32.totalorder %s82, %s83
      %p94 = scmp.eq.s32.totalorder %s22, 0
      %p95 = por %p93, %p94
      %p96 = scmp.ne.s32.totalorder %s82, %s83
      %p97 = scmp.eq.s32.totalorder %s23, 1
      %p98 = por %p96, %p97
      %p100 = scmp.ne.s32.totalorder %s83, %s99
      %p101 = scmp.eq.s32.totalorder %s23, 0
      %p102 = por %p100, %p101
      %p103 = scmp.le.s32.totalorder 1, %s17
      %p104 = scmp.lt.s32.totalorder %s17, 3
      %p105 = pnand %p103, %p104
      %p106 = pneg %p105
      // Predicated region
      $region9: #{positional_encoding_add.1} parent=5 // pred_check
        _
      $region10: #{positional_encoding_add.1} parent=5 // pred_check_branch
        %108 = sbr.rel (%p105) target = $region12
      $region11: #{positional_encoding_add.1} parent=5 // pred_region
        %s109 = ssub.s32 %s17, 1
      $region12: #{positional_encoding_add.1} parent=5 // pred_fallthru
        _
      %p110 = scmp.lt.s32.totalorder %s17, 2
      // Predicated region
      $region13: #{positional_encoding_add.1} parent=5 // pred_check
        %p111 = pneg %p110
      $region14: #{positional_encoding_add.1} parent=5 // pred_check_branch
        %113 = sbr.rel (%p111) target = $region16
      $region15: #{positional_encoding_add.1} parent=5 // pred_region
        // Predicated region
        $region17: #{positional_encoding_add.1} parent=15 // pred_check
          %p114 = pneg %p37
        $region18: #{positional_encoding_add.1} parent=15 // pred_check_branch
          %116 = sbr.rel (%p114) target = $region20
        $region19: #{positional_encoding_add.1} parent=15 // pred_region
          #allocation9 [shape = 'u32[6]{0}', space=smem, size = 0x18, scoped, tag = 'DMA stride descriptor']
          %s117 = sand.u32 %s27, 1
          %s118 = scalar_lea.sflag [#allocation3], %s117
          %s119 = sand.u32 %s27, 1
          %s120 = smul.addr %s119, 64
          %s121 = scalar_lea.vmem [#allocation2], %s120
          %s122 = smul.u32 4, %s17
          %124 = vsyncadd %s118, 0
          %s125 = smul.addr %s122, 8
          %s126 = scalar_lea.hbm %s0, %s125
          %s128 = sshll.u32 1, 14
          %s129 = sxor.u32 4294967295, %s128
          %s131 = sld [smem:[#allocation0]]
          %s132 = sadd.s32 2, %s131
          %s134 = sshll.u32 7, 26
          %s135 = sxor.u32 4294967295, %s134
          %s136 = sand.u32 0, %s135
          %s137 = sshll.u32 %s132, 26
          %s138 = sor.u32 %s136, %s137
          %s139 = sshll.u32 %s126, 4
          %s140 = int_to_ptr.hbm [resolvable:$true] %s139
          %s141 = sshll.u32 %s121, 4
          %s142 = int_to_ptr.vmem [resolvable:$true] %s141
          %148 = sst [smem:[#allocation9]] 1024
          %s149 = scalar_lea.smem [#allocation9], 1
          %150 = sst [smem:[%s149]] 512
          %s151 = scalar_lea.smem [#allocation9], 2
          %152 = sst [smem:[%s151]] 4
          %s153 = scalar_lea.smem [#allocation9], 3
          %154 = sst [smem:[%s153]] 128
          %s155 = scalar_lea.smem [#allocation9], 4
          %156 = sst [smem:[%s155]] 128
          %s157 = scalar_lea.smem [#allocation9], 5
          %158 = sst [smem:[%s157]] 8
          %160 = dma.general %s140, 1024, %s142, %s118, [#allocation8], [#allocation9], %s138, 0
        $region20: #{positional_encoding_add.1} parent=15 // pred_fallthru
          _
        // Predicated region
        $region21: #{positional_encoding_add.1} parent=15 // pred_check
          %p161 = pneg %p63
        $region22: #{positional_encoding_add.1} parent=15 // pred_check_branch
          %163 = sbr.rel (%p161) target = $region24
        $region23: #{positional_encoding_add.1} parent=15 // pred_region
          %s164 = sand.u32 %s53, 1
          %s165 = scalar_lea.sflag [#allocation6], %s164
          %s166 = sand.u32 %s53, 1
          %s167 = smul.addr %s166, 32
          %s168 = scalar_lea.vmem [#allocation5], %s167
          %s169 = smul.u32 4, %s17
          %171 = vsyncadd %s165, 0
          %s172 = smul.addr %s169, 8
          %s173 = scalar_lea.hbm %s1, %s172
          %s174 = sshll.u32 %s173, 4
          %s175 = int_to_ptr.hbm [resolvable:$true] %s174
          %s176 = sshll.u32 %s168, 4
          %s177 = int_to_ptr.vmem [resolvable:$true] %s176
          %182 = dma.hbm_to_vmem [thread:$0]  %s175, 512, %s177, %s165, 128, 128, 8
        $region24: #{positional_encoding_add.1} parent=15 // pred_fallthru
          _
      $region16: #{positional_encoding_add.1} parent=5 // pred_fallthru
        _
      %p183 = scmp.le.s32.totalorder 1, %s17
      %p184 = scmp.lt.s32.totalorder %s17, 3
      %p185 = pnand %p183, %p184
      %p186 = pneg %p185
      // Predicated region
      $region25: #{positional_encoding_add.1} parent=5 // pred_check
        _
      $region26: #{positional_encoding_add.1} parent=5 // pred_check_branch
        %188 = sbr.rel (%p185) target = $region28
      $region27: #{positional_encoding_add.1} parent=5 // pred_region
        %s189 = ssub.s32 %s17, 1
        %s190 = sand.u32 %s30, 1
        %s191 = scalar_lea.sflag [#allocation3], %s190
        %s192 = sand.u32 %s30, 1
        %s193 = smul.addr %s192, 64
        %s194 = scalar_lea.vmem [#allocation2], %s193
        // Predicated region
        $region29: #{positional_encoding_add.1} parent=27 // pred_check
          %p195 = pneg %p43
        $region30: #{positional_encoding_add.1} parent=27 // pred_check_branch
          %197 = sbr.rel (%p195) target = $region32
        $region31: #{positional_encoding_add.1} parent=27 // pred_region
          %199 = dma.done %s191, 1024
        $region32: #{positional_encoding_add.1} parent=27 // pred_fallthru
          _
        %s200 = sand.u32 %s56, 1
        %s201 = scalar_lea.sflag [#allocation6], %s200
        %s202 = sand.u32 %s56, 1
        %s203 = smul.addr %s202, 32
        %s204 = scalar_lea.vmem [#allocation5], %s203
        // Predicated region
        $region33: #{positional_encoding_add.1} parent=27 // pred_check
          %p205 = pneg %p69
        $region34: #{positional_encoding_add.1} parent=27 // pred_check_branch
          %207 = sbr.rel (%p205) target = $region36
        $region35: #{positional_encoding_add.1} parent=27 // pred_region
          %209 = dma.done %s201, 512
        $region36: #{positional_encoding_add.1} parent=27 // pred_fallthru
          _
        %s210 = sand.u32 %s30, 1
        %s211 = scalar_lea.sflag [#allocation3], %s210
        %s212 = sand.u32 %s30, 1
        %s213 = smul.addr %s212, 64
        %s214 = scalar_lea.vmem [#allocation2], %s213
        %p215 = pneg %p43
        %p216 = pneg %p40
        %s217 = sand.u32 %s56, 1
        %s218 = scalar_lea.sflag [#allocation6], %s217
        %s219 = sand.u32 %s56, 1
        %s220 = smul.addr %s219, 32
        %s221 = scalar_lea.vmem [#allocation5], %s220
        %p222 = pneg %p69
        %p223 = pneg %p66
        %p224 = pneg %p95
        %p225 = pneg %p92
        %s226 = sand.u32 %s82, 1
        %s227 = scalar_lea.sflag [#allocation4], %s226
        %s228 = sand.u32 %s82, 1
        %s229 = smul.addr %s228, 64
        %s230 = scalar_lea.vmem [#allocation7], %s229
        %s231 = smul.u32 4, %s22
        %s232 = smul.u32 4, %s22
        %s233 = smul.u32 4, %s22
        %v234 = vld [vmem:[%s194] sm:$0xff]
        %v235 = vld [vmem:[%s194 + $0x8] sm:$0xff]
        %v236 = vld [vmem:[%s194 + $0x10] sm:$0xff]
        %v237 = vld [vmem:[%s194 + $0x18] sm:$0xff]
        %v238 = vld [vmem:[%s194 + $0x20] sm:$0xff]
        %v239 = vld [vmem:[%s194 + $0x28] sm:$0xff]
        %v240 = vld [vmem:[%s194 + $0x30] sm:$0xff]
        %v241 = vld [vmem:[%s194 + $0x38] sm:$0xff]
        %v242 = vld [vmem:[%s204] sm:$0xff]
        %v243 = vld [vmem:[%s204 + $0x8] sm:$0xff]
        %v244 = vld [vmem:[%s204 + $0x10] sm:$0xff]
        %v245 = vld [vmem:[%s204 + $0x18] sm:$0xff]
        %v246 = vmul.f32 %v234, 11.313708
        %v247 = vmul.f32 %v235, 11.313708
        %v248 = vmul.f32 %v236, 11.313708
        %v249 = vmul.f32 %v237, 11.313708
        %v250 = vmul.f32 %v238, 11.313708
        %v251 = vmul.f32 %v239, 11.313708
        %v252 = vmul.f32 %v240, 11.313708
        %v253 = vmul.f32 %v241, 11.313708
        %v254 = vadd.f32 %v246, %v242
        %v255 = vadd.f32 %v247, %v243
        %v256 = vadd.f32 %v248, %v244
        %v257 = vadd.f32 %v249, %v245
        %v258 = vadd.f32 %v250, %v242
        %v259 = vadd.f32 %v251, %v243
        %v260 = vadd.f32 %v252, %v244
        %v261 = vadd.f32 %v253, %v245
        %262 = vst [vmem:[%s230] sm:$0xff] %v254
        %263 = vst [vmem:[%s230 + $0x8] sm:$0xff] %v255
        %264 = vst [vmem:[%s230 + $0x10] sm:$0xff] %v256
        %265 = vst [vmem:[%s230 + $0x18] sm:$0xff] %v257
        %266 = vst [vmem:[%s230 + $0x20] sm:$0xff] %v258
        %267 = vst [vmem:[%s230 + $0x28] sm:$0xff] %v259
        %268 = vst [vmem:[%s230 + $0x30] sm:$0xff] %v260
        %269 = vst [vmem:[%s230 + $0x38] sm:$0xff] %v261
        %s270 = sand.u32 %s82, 1
        %s271 = scalar_lea.sflag [#allocation4], %s270
        %s272 = sand.u32 %s82, 1
        %s273 = smul.addr %s272, 64
        %s274 = scalar_lea.vmem [#allocation7], %s273
        // Predicated region
        $region37: #{positional_encoding_add.1} parent=27 // pred_check
          %p275 = pneg %p92
        $region38: #{positional_encoding_add.1} parent=27 // pred_check_branch
          %277 = sbr.rel (%p275) target = $region40
        $region39: #{positional_encoding_add.1} parent=27 // pred_region
          #allocation11 [shape = 'u32[6]{0}', space=smem, size = 0x18, scoped, tag = 'DMA stride descriptor']
          %s278 = smul.u32 4, %s22
          %280 = vsyncadd %s271, 0
          %s281 = smul.addr %s278, 8
          %s282 = scalar_lea.hbm %s2, %s281
          %s284 = sshll.u32 1, 14
          %s285 = sxor.u32 4294967295, %s284
          %s288 = sshll.u32 7, 18
          %s289 = sxor.u32 4294967295, %s288
          %s290 = sand.u32 0, %s289
          %s292 = sor.u32 %s290, 0
          %s293 = sshll.u32 %s274, 4
          %s294 = int_to_ptr.vmem [resolvable:$true] %s293
          %s295 = sshll.u32 %s282, 4
          %s296 = int_to_ptr.hbm [resolvable:$true] %s295
          %302 = sst [smem:[#allocation11]] 512
          %s303 = scalar_lea.smem [#allocation11], 1
          %304 = sst [smem:[%s303]] 1024
          %s305 = scalar_lea.smem [#allocation11], 2
          %306 = sst [smem:[%s305]] 4
          %s307 = scalar_lea.smem [#allocation11], 3
          %308 = sst [smem:[%s307]] 128
          %s309 = scalar_lea.smem [#allocation11], 4
          %310 = sst [smem:[%s309]] 128
          %s311 = scalar_lea.smem [#allocation11], 5
          %312 = sst [smem:[%s311]] 8
          %314 = dma.general %s294, 1024, %s296, %s271, [#allocation10], [#allocation11], %s292, 0
        $region40: #{positional_encoding_add.1} parent=27 // pred_fallthru
          _
      $region28: #{positional_encoding_add.1} parent=5 // pred_fallthru
        _
      %p315 = scmp.le.s32.totalorder 2, %s17
      // Predicated region
      $region41: #{positional_encoding_add.1} parent=5 // pred_check
        %p316 = pneg %p315
      $region42: #{positional_encoding_add.1} parent=5 // pred_check_branch
        %318 = sbr.rel (%p316) target = $region44
      $region43: #{positional_encoding_add.1} parent=5 // pred_region
        %s319 = ssub.s32 %s17, 2
        // Predicated region
        $region45: #{positional_encoding_add.1} parent=43 // pred_check
          %p320 = pneg %p98
        $region46: #{positional_encoding_add.1} parent=43 // pred_check_branch
          %322 = sbr.rel (%p320) target = $region48
        $region47: #{positional_encoding_add.1} parent=43 // pred_region
          %s323 = sand.u32 %s83, 1
          %s324 = scalar_lea.sflag [#allocation4], %s323
          %s325 = sand.u32 %s83, 1
          %s326 = smul.addr %s325, 64
          %s327 = scalar_lea.vmem [#allocation7], %s326
          %329 = dma.done %s324, 1024
        $region48: #{positional_encoding_add.1} parent=43 // pred_fallthru
          _
      $region44: #{positional_encoding_add.1} parent=5 // pred_fallthru
        _
    $region6: #{positional_encoding_add.1} parent=1 // loop_footer
      %s21 = sadd.s32 1, %s17
    $region7: #{positional_encoding_add.1} parent=1 // loop_footer_branch
      %16 = sbr.rel target = $region3
    $region8: #{positional_encoding_add.1} parent=1 // loop_exit
      _
    %330 = vsyncpa [#allocation3], 1
    %s331 = scalar_lea.sflag [#allocation3], 1
    %332 = vsyncpa %s331, 1
    %333 = vsyncpa [#allocation6], 1
    %s334 = scalar_lea.sflag [#allocation6], 1
    %335 = vsyncpa %s334, 1
    %336 = vsyncpa [#allocation4], 1
    %s337 = scalar_lea.sflag [#allocation4], 1
    %338 = vsyncpa %s337, 1

</llo_original>
